<compile_context>
chip_gen: v7x
topology: tpu7x:2x2x1
jax: 0.10.0
libtpu: 0.0.40
codegen_flags: <defaults>
</compile_context>

<pallas_src>
import numpy as np
import jax
import jax.numpy as jnp
from jax import lax
from jax.experimental import pallas as pl
from jax.experimental.pallas import tpu as pltpu


# --------------------------------------------------------------------------
# Kernel 1: duration predictor
#   Conv1d -> LayerNorm -> ReLU -> Conv1d -> LayerNorm -> ReLU
#   -> Linear(F,1) -> ReLU          (dropout = eval/identity)
# --------------------------------------------------------------------------
def predictor_kernel(x_ref, w1_ref, b1_ref, g1_ref, be1_ref,
                     w2_ref, b2_ref, g2_ref, be2_ref,
                     wl_ref, bl_ref, dpo_ref):
    Bblk, T, D = x_ref.shape
    KD, F = w1_ref.shape
    K = KD // D
    pad = (K - 1) // 2

    def tap_slab(xb, C):
        # xb: (T, C)  ->  (T, K*C): K zero-padded shifted copies, one per tap.
        if pad > 0:
            zp = jnp.zeros((pad, C), jnp.float32)
            xp = jnp.concatenate([zp, xb, zp], axis=0)        # (T + 2*pad, C)
        else:
            xp = xb
        if K == 1:
            return xp[0:T]
        return jnp.concatenate([xp[k:k + T] for k in range(K)], axis=1)

    def layernorm_relu(h, g_ref, be_ref):
        mu = jnp.mean(h, axis=-1, keepdims=True)
        var = jnp.mean(jnp.square(h - mu), axis=-1, keepdims=True)
        hn = (h - mu) * lax.rsqrt(var + 1e-5)
        return jnp.maximum(hn * g_ref[...] + be_ref[...], 0.0)

    x32 = x_ref[...].astype(jnp.float32)                      # (Bblk, T, D)

    # Conv1: all taps fused into a single (Bblk*T, K*D) @ (K*D, F) matmul.
    slab1 = jnp.concatenate([tap_slab(x32[b], D) for b in range(Bblk)], axis=0)
    h1 = jnp.dot(slab1, w1_ref[...],
                 preferred_element_type=jnp.float32) + b1_ref[...]
    h1 = layernorm_relu(h1, g1_ref, be1_ref)                  # (Bblk*T, F)

    # Conv2.
    slab2 = jnp.concatenate(
        [tap_slab(h1[b * T:(b + 1) * T], F) for b in range(Bblk)], axis=0)
    h2 = jnp.dot(slab2, w2_ref[...],
                 preferred_element_type=jnp.float32) + b2_ref[...]
    h2 = layernorm_relu(h2, g2_ref, be2_ref)                  # (Bblk*T, F)

    # Linear(F -> 1) + ReLU, emitted as a lane-dense (1, Bblk*T) row
    # (wl (1,F) contracted against h2 (Bblk*T, F) -> A @ B^T on the MXU).
    d_row = lax.dot_general(wl_ref[...], h2,
                            dimension_numbers=(((1,), (1,)), ((), ())),
                            preferred_element_type=jnp.float32)  # (1, Bblk*T)
    d_row = jnp.maximum(d_row + bl_ref[...], 0.0)
    for b in range(Bblk):                                      # static unroll
        dpo_ref[b] = d_row[:, b * T:(b + 1) * T]               # (1, T) store


def _largest_divisor_leq(n, cap):
    for d in range(min(n, cap), 0, -1):
        if n % d == 0:
            return d
    return 1


def run_duration_predictor(x, params, block_b=8):
    B, T, D = x.shape
    K, _, F = params["w1"].shape
    Bblk = _largest_divisor_leq(B, block_b)
    w1f = params["w1"].reshape(K * D, F)     # fused-tap weight (K*D, F)
    w2f = params["w2"].reshape(K * F, F)     # fused-tap weight (K*F, F)
    out = pl.pallas_call(
        predictor_kernel,
        out_shape=jax.ShapeDtypeStruct((B, 1, T), jnp.float32),
        grid_spec=pltpu.PrefetchScalarGridSpec(
            num_scalar_prefetch=0,
            grid=(B // Bblk,),
            in_specs=[
                pl.BlockSpec((Bblk, T, D), lambda b: (b, 0, 0)),  # x
                pl.BlockSpec((K * D, F), lambda b: (0, 0)),       # w1 (fused)
                pl.BlockSpec((1, F), lambda b: (0, 0)),           # b1
                pl.BlockSpec((1, F), lambda b: (0, 0)),           # gamma1
                pl.BlockSpec((1, F), lambda b: (0, 0)),           # beta1
                pl.BlockSpec((K * F, F), lambda b: (0, 0)),       # w2 (fused)
                pl.BlockSpec((1, F), lambda b: (0, 0)),           # b2
                pl.BlockSpec((1, F), lambda b: (0, 0)),           # gamma2
                pl.BlockSpec((1, F), lambda b: (0, 0)),           # beta2
                pl.BlockSpec((1, F), lambda b: (0, 0)),           # linear weight
                pl.BlockSpec((1, 1), lambda b: (0, 0)),           # linear bias
            ],
            out_specs=pl.BlockSpec((Bblk, 1, T), lambda b: (b, 0, 0)),
        ),
        compiler_params=pltpu.CompilerParams(dimension_semantics=("parallel",)),
    )(x, w1f, params["b1"], params["g1"], params["beta1"],
      w2f, params["b2"], params["g2"], params["beta2"],
      params["wl"], params["bl"])
    return out[:, 0, :]  # (B, T)


# --------------------------------------------------------------------------
# Kernel 2: length regulation (alignment @ x), tiled over mel frames
# --------------------------------------------------------------------------
def lr_kernel(dur_ref, x_ref, out_ref):
    # dur_ref: (1, 1, T)   x_ref: (1, T, D) bf16   out_ref: (1, TM, D)
    T = dur_ref.shape[2]
    TM = out_ref.shape[1]

    dur = dur_ref[0].astype(jnp.float32)                      # (1, T)

    # Inclusive prefix sum over the lane axis: log2(T) shifted adds (no (T,T)
    # triangular matmul, no iota masks).
    cum = dur
    shift = 1
    while shift < T:
        z = jnp.zeros((1, shift), jnp.float32)
        cum = cum + jnp.concatenate([z, cum[:, :T - shift]], axis=1)
        shift *= 2
    start = cum - dur                                         # (1, T)

    # Mel-frame indices for this output tile.
    offset = (pl.program_id(1) * TM).astype(jnp.float32)
    mel = lax.broadcasted_iota(jnp.float32, (TM, 1), 0) + offset

    # alignment[m, i] = 1  iff  start[i] <= m < cum[i]   (exact 0/1 in bf16)
    align = jnp.logical_and(mel >= start, mel < cum).astype(jnp.bfloat16)  # (TM,T)
    out = jnp.dot(align, x_ref[0],
                  preferred_element_type=jnp.float32)         # (TM, D) f32 acc
    out_ref[0] = out.astype(out_ref.dtype)


def run_length_regulator(x, durations, mel_max_length, block_m=512):
    B, T, D = x.shape
    M = int(mel_max_length)
    TM = M if M <= block_m else block_m                       # 512 is 8-aligned
    n_m = pl.cdiv(M, TM)
    dur3 = durations.astype(jnp.float32).reshape(B, 1, T)
    x_bf = x.astype(jnp.bfloat16)                             # halves x DMA
    return pl.pallas_call(
        lr_kernel,
        out_shape=jax.ShapeDtypeStruct((B, M, D), x.dtype),
        grid_spec=pltpu.PrefetchScalarGridSpec(
            num_scalar_prefetch=0,
            grid=(B, n_m),
            in_specs=[
                pl.BlockSpec((1, 1, T), lambda b, m: (b, 0, 0)),   # durations
                pl.BlockSpec((1, T, D), lambda b, m: (b, 0, 0)),   # x (bf16)
            ],
            out_specs=pl.BlockSpec((1, TM, D), lambda b, m: (b, m, 0)),
        ),
        compiler_params=pltpu.CompilerParams(
            dimension_semantics=("parallel", "parallel")),
    )(dur3, x_bf)


# --------------------------------------------------------------------------
# Module wrapper
# --------------------------------------------------------------------------
class LengthRegulatorPallas:
    def __init__(self, encoder_dim, duration_predictor_filter_size,
                 duration_predictor_kernel_size, dropout=0.1, seed=0):
        D = encoder_dim
        F = duration_predictor_filter_size
        K = duration_predictor_kernel_size
        self.D, self.F, self.K = D, F, K
        # dropout is identity at eval time (no RNG path in the kernel).
        ks = jax.random.split(jax.random.PRNGKey(seed), 10)
        s1 = 1.0 / np.sqrt(D * K)
        s2 = 1.0 / np.sqrt(F * K)
        sl = 1.0 / np.sqrt(F)
        self.params = dict(
            w1=jax.random.uniform(ks[0], (K, D, F), jnp.float32, -s1, s1),
            b1=jax.random.uniform(ks[1], (1, F), jnp.float32, -s1, s1),
            g1=1.0 + 0.1 * jax.random.normal(ks[2], (1, F), jnp.float32),
            beta1=0.1 * jax.random.normal(ks[3], (1, F), jnp.float32),
            w2=jax.random.uniform(ks[4], (K, F, F), jnp.float32, -s2, s2),
            b2=jax.random.uniform(ks[5], (1, F), jnp.float32, -s2, s2),
            g2=1.0 + 0.1 * jax.random.normal(ks[6], (1, F), jnp.float32),
            beta2=0.1 * jax.random.normal(ks[7], (1, F), jnp.float32),
            wl=jax.random.uniform(ks[8], (1, F), jnp.float32, -sl, sl),
            bl=jax.random.uniform(ks[9], (1, 1), jnp.float32, -sl, sl),
        )

    def __call__(self, x, alpha=1.0, target=None, mel_max_length=None):
        dpo = run_duration_predictor(x, self.params)          # (B, T)
        if target is not None:
            if mel_max_length is None:
                raise ValueError("mel_max_length must be static for the TPU kernel")
            output = run_length_regulator(x, target, mel_max_length)
            return output, dpo
        # TODO(synk): target=None path produces a data-dependent output length
        # (expand_max_len) and a dynamic mel_pos; not expressible with static shapes.
        raise NotImplementedError("inference path has dynamic output length")


# --------------------------------------------------------------------------
# Pure numpy reference (mirrors the PyTorch module) for verification
# --------------------------------------------------------------------------
def _conv_ref(xb, W, b, pad):
    T, K = xb.shape[0], W.shape[0]
    xp = np.pad(xb, ((pad, pad), (0, 0)))
    h = np.zeros((T, W.shape[2]), np.float64)
    for k in range(K):
        h += xp[k:k + T] @ W[k]
    return h + b[0]


def _ln_relu_ref(h, g, be):
    mu = h.mean(-1, keepdims=True)
    var = ((h - mu) ** 2).mean(-1, keepdims=True)
    hn = (h - mu) / np.sqrt(var + 1e-5)
    return np.maximum(hn * g[0] + be[0], 0.0)


def predictor_ref(x, p, K):
    pad = (K - 1) // 2
    p = {k: np.asarray(v, np.float64) for k, v in p.items()}
    outs = []
    for b in range(x.shape[0]):
        h = _ln_relu_ref(_conv_ref(np.asarray(x[b], np.float64), p["w1"], p["b1"], pad),
                         p["g1"], p["beta1"])
        h = _ln_relu_ref(_conv_ref(h, p["w2"], p["b2"], pad), p["g2"], p["beta2"])
        d = np.maximum((h * p["wl"][0]).sum(-1) + p["bl"][0, 0], 0.0)
        outs.append(d)
    return np.stack(outs)


def lr_ref(x, dur, M):
    x = np.asarray(x)
    dur = np.asarray(dur)
    B, T, D = x.shape
    out = np.zeros((B, M, D), np.float32)
    for b in range(B):
        count = 0
        for i in range(T):
            for k in range(int(dur[b, i])):
                out[b, count + k] = x[b, i]
            count += int(dur[b, i])
    return out


# --------------------------------------------------------------------------
if __name__ == "__main__":
    B, T, D = 2, 8, 32            # batch, sequence, encoder_dim
    F, K = 32, 3                  # duration predictor filter size / kernel size
    MEL_MAX_LEN = 48              # static mel_max_length (>= max total duration)

    key = jax.random.PRNGKey(0)
    kx, kt = jax.random.split(key)
    x = jax.random.normal(kx, (B, T, D), jnp.float32)
    target = jax.random.randint(kt, (B, T), 1, 5)      # ground-truth durations 1..4

    module = LengthRegulatorPallas(D, F, K, dropout=0.1, seed=0)
    output, dpo = module(x, target=target, mel_max_length=MEL_MAX_LEN)
    output, dpo = jax.block_until_ready((output, dpo))

    # Verify against the plain reference implementation.
    dpo_ref = predictor_ref(np.asarray(x), module.params, K)
    out_ref = lr_ref(np.asarray(x), np.asarray(target), MEL_MAX_LEN)
    np.testing.assert_allclose(np.asarray(dpo), dpo_ref, rtol=2e-2, atol=2e-2)
    np.testing.assert_allclose(np.asarray(output), out_ref, rtol=2e-2, atol=2e-2)
    assert output.shape == (B, MEL_MAX_LEN, D) and dpo.shape == (B, T)

    print("KERNEL_OK")
</pallas_src>

<mosaic_0001>
module attributes {stable_mosaic.version = 11 : i64} {
  func.func @predictor_kernel(%arg0: i32, %arg1: memref<2x8x32xf32, #tpu.memory_space<vmem>>, %arg2: memref<96x32xf32, #tpu.memory_space<vmem>>, %arg3: memref<1x32xf32, #tpu.memory_space<vmem>>, %arg4: memref<1x32xf32, #tpu.memory_space<vmem>>, %arg5: memref<1x32xf32, #tpu.memory_space<vmem>>, %arg6: memref<96x32xf32, #tpu.memory_space<vmem>>, %arg7: memref<1x32xf32, #tpu.memory_space<vmem>>, %arg8: memref<1x32xf32, #tpu.memory_space<vmem>>, %arg9: memref<1x32xf32, #tpu.memory_space<vmem>>, %arg10: memref<1x32xf32, #tpu.memory_space<vmem>>, %arg11: memref<1x1xf32, #tpu.memory_space<vmem>>, %arg12: memref<2x1x8xf32, #tpu.memory_space<vmem>>) attributes {dimension_semantics = [#tpu.dimension_semantics<parallel>], iteration_bounds = array<i64: 1>, scalar_prefetch = 0 : i64, scratch_operands = 0 : i64, tpu.core_type = #tpu.core_type<tc>, window_params = [{transform_indices = @transform_0, window_bounds = array<i64: 2, 8, 32>}, {pipeline_mode = #tpu.pipeline_mode<synchronous>, transform_indices = @transform_1, window_bounds = array<i64: 96, 32>}, {pipeline_mode = #tpu.pipeline_mode<synchronous>, transform_indices = @transform_2, window_bounds = array<i64: 1, 32>}, {pipeline_mode = #tpu.pipeline_mode<synchronous>, transform_indices = @transform_3, window_bounds = array<i64: 1, 32>}, {pipeline_mode = #tpu.pipeline_mode<synchronous>, transform_indices = @transform_4, window_bounds = array<i64: 1, 32>}, {pipeline_mode = #tpu.pipeline_mode<synchronous>, transform_indices = @transform_5, window_bounds = array<i64: 96, 32>}, {pipeline_mode = #tpu.pipeline_mode<synchronous>, transform_indices = @transform_6, window_bounds = array<i64: 1, 32>}, {pipeline_mode = #tpu.pipeline_mode<synchronous>, transform_indices = @transform_7, window_bounds = array<i64: 1, 32>}, {pipeline_mode = #tpu.pipeline_mode<synchronous>, transform_indices = @transform_8, window_bounds = array<i64: 1, 32>}, {pipeline_mode = #tpu.pipeline_mode<synchronous>, transform_indices = @transform_9, window_bounds = array<i64: 1, 32>}, {pipeline_mode = #tpu.pipeline_mode<synchronous>, transform_indices = @transform_10, window_bounds = array<i64: 1, 1>}, {transform_indices = @transform_11, window_bounds = array<i64: 2, 1, 8>}]} {
    %c0 = arith.constant 0 : index
    %c0_0 = arith.constant 0 : index
    %c0_1 = arith.constant 0 : index
    %0 = vector.load %arg1[%c0, %c0_0, %c0_1] : memref<2x8x32xf32, #tpu.memory_space<vmem>>, vector<2x8x32xf32>
    %1 = vector.extract_strided_slice %0 {offsets = [0, 0, 0], sizes = [1, 8, 32], strides = [1, 1, 1]} : vector<2x8x32xf32> to vector<1x8x32xf32>
    %2 = vector.shape_cast %1 : vector<1x8x32xf32> to vector<8x32xf32>
    %cst = arith.constant 0.000000e+00 : f32
    %3 = vector.broadcast %cst : f32 to vector<1x32xf32>
    %4 = tpu.concatenate %3, %2, %3 in 0 : vector<1x32xf32>, vector<8x32xf32>, vector<1x32xf32> -> vector<10x32xf32>
    %5 = vector.extract_strided_slice %4 {offsets = [0, 0], sizes = [8, 32], strides = [1, 1]} : vector<10x32xf32> to vector<8x32xf32>
    %6 = vector.extract_strided_slice %4 {offsets = [1, 0], sizes = [8, 32], strides = [1, 1]} : vector<10x32xf32> to vector<8x32xf32>
    %7 = vector.extract_strided_slice %4 {offsets = [2, 0], sizes = [8, 32], strides = [1, 1]} : vector<10x32xf32> to vector<8x32xf32>
    %8 = tpu.concatenate %5, %6, %7 in 1 : vector<8x32xf32>, vector<8x32xf32>, vector<8x32xf32> -> vector<8x96xf32>
    %9 = vector.extract_strided_slice %0 {offsets = [1, 0, 0], sizes = [1, 8, 32], strides = [1, 1, 1]} : vector<2x8x32xf32> to vector<1x8x32xf32>
    %10 = vector.shape_cast %9 : vector<1x8x32xf32> to vector<8x32xf32>
    %cst_2 = arith.constant 0.000000e+00 : f32
    %11 = vector.broadcast %cst_2 : f32 to vector<1x32xf32>
    %12 = tpu.concatenate %11, %10, %11 in 0 : vector<1x32xf32>, vector<8x32xf32>, vector<1x32xf32> -> vector<10x32xf32>
    %13 = vector.extract_strided_slice %12 {offsets = [0, 0], sizes = [8, 32], strides = [1, 1]} : vector<10x32xf32> to vector<8x32xf32>
    %14 = vector.extract_strided_slice %12 {offsets = [1, 0], sizes = [8, 32], strides = [1, 1]} : vector<10x32xf32> to vector<8x32xf32>
    %15 = vector.extract_strided_slice %12 {offsets = [2, 0], sizes = [8, 32], strides = [1, 1]} : vector<10x32xf32> to vector<8x32xf32>
    %16 = tpu.concatenate %13, %14, %15 in 1 : vector<8x32xf32>, vector<8x32xf32>, vector<8x32xf32> -> vector<8x96xf32>
    %17 = tpu.concatenate %8, %16 in 0 : vector<8x96xf32>, vector<8x96xf32> -> vector<16x96xf32>
    %c0_3 = arith.constant 0 : index
    %c0_4 = arith.constant 0 : index
    %18 = vector.load %arg2[%c0_3, %c0_4] : memref<96x32xf32, #tpu.memory_space<vmem>>, vector<96x32xf32>
    %cst_5 = arith.constant dense<0.000000e+00> : vector<16x32xf32>
    %19 = tpu.matmul %17, %18, %cst_5 {dimension_numbers = #tpu.dot_dimension_numbers<[1], [0], [0], [1], [0, 0, 1, 1], [], []>} : vector<16x96xf32>, vector<96x32xf32>, vector<16x32xf32> -> vector<16x32xf32>
    %c0_6 = arith.constant 0 : index
    %c0_7 = arith.constant 0 : index
    %20 = vector.load %arg3[%c0_6, %c0_7] : memref<1x32xf32, #tpu.memory_space<vmem>>, vector<1x32xf32>
    %21 = vector.broadcast %20 : vector<1x32xf32> to vector<16x32xf32>
    %22 = arith.addf %19, %21 : vector<16x32xf32>
    %cst_8 = arith.constant dense<0.000000e+00> : vector<16xf32>
    %23 = vector.multi_reduction <add>, %22, %cst_8 [1] : vector<16x32xf32> to vector<16xf32>
    %24 = vector.shape_cast %23 : vector<16xf32> to vector<16x1xf32>
    %cst_9 = arith.constant 3.200000e+01 : f32
    %25 = vector.broadcast %cst_9 : f32 to vector<16x1xf32>
    %26 = arith.divf %24, %25 : vector<16x1xf32>
    %27 = vector.broadcast %26 : vector<16x1xf32> to vector<16x32xf32>
    %28 = arith.subf %22, %27 : vector<16x32xf32>
    %29 = arith.mulf %28, %28 : vector<16x32xf32>
    %cst_10 = arith.constant dense<0.000000e+00> : vector<16xf32>
    %30 = vector.multi_reduction <add>, %29, %cst_10 [1] : vector<16x32xf32> to vector<16xf32>
    %31 = vector.shape_cast %30 : vector<16xf32> to vector<16x1xf32>
    %cst_11 = arith.constant 3.200000e+01 : f32
    %32 = vector.broadcast %cst_11 : f32 to vector<16x1xf32>
    %33 = arith.divf %31, %32 : vector<16x1xf32>
    %34 = vector.broadcast %26 : vector<16x1xf32> to vector<16x32xf32>
    %35 = arith.subf %22, %34 : vector<16x32xf32>
    %cst_12 = arith.constant 9.99999974E-6 : f32
    %36 = vector.broadcast %cst_12 : f32 to vector<16x1xf32>
    %37 = arith.addf %33, %36 : vector<16x1xf32>
    %38 = math.rsqrt %37 : vector<16x1xf32>
    %39 = vector.broadcast %38 : vector<16x1xf32> to vector<16x32xf32>
    %40 = arith.mulf %35, %39 : vector<16x32xf32>
    %c0_13 = arith.constant 0 : index
    %c0_14 = arith.constant 0 : index
    %41 = vector.load %arg4[%c0_13, %c0_14] : memref<1x32xf32, #tpu.memory_space<vmem>>, vector<1x32xf32>
    %42 = vector.broadcast %41 : vector<1x32xf32> to vector<16x32xf32>
    %43 = arith.mulf %40, %42 : vector<16x32xf32>
    %c0_15 = arith.constant 0 : index
    %c0_16 = arith.constant 0 : index
    %44 = vector.load %arg5[%c0_15, %c0_16] : memref<1x32xf32, #tpu.memory_space<vmem>>, vector<1x32xf32>
    %45 = vector.broadcast %44 : vector<1x32xf32> to vector<16x32xf32>
    %46 = arith.addf %43, %45 : vector<16x32xf32>
    %cst_17 = arith.constant 0.000000e+00 : f32
    %47 = vector.broadcast %cst_17 : f32 to vector<16x32xf32>
    %48 = arith.maximumf %46, %47 : vector<16x32xf32>
    %49 = vector.extract_strided_slice %48 {offsets = [0, 0], sizes = [8, 32], strides = [1, 1]} : vector<16x32xf32> to vector<8x32xf32>
    %cst_18 = arith.constant 0.000000e+00 : f32
    %50 = vector.broadcast %cst_18 : f32 to vector<1x32xf32>
    %51 = tpu.concatenate %50, %49, %50 in 0 : vector<1x32xf32>, vector<8x32xf32>, vector<1x32xf32> -> vector<10x32xf32>
    %52 = vector.extract_strided_slice %51 {offsets = [0, 0], sizes = [8, 32], strides = [1, 1]} : vector<10x32xf32> to vector<8x32xf32>
    %53 = vector.extract_strided_slice %51 {offsets = [1, 0], sizes = [8, 32], strides = [1, 1]} : vector<10x32xf32> to vector<8x32xf32>
    %54 = vector.extract_strided_slice %51 {offsets = [2, 0], sizes = [8, 32], strides = [1, 1]} : vector<10x32xf32> to vector<8x32xf32>
    %55 = tpu.concatenate %52, %53, %54 in 1 : vector<8x32xf32>, vector<8x32xf32>, vector<8x32xf32> -> vector<8x96xf32>
    %56 = vector.extract_strided_slice %48 {offsets = [8, 0], sizes = [8, 32], strides = [1, 1]} : vector<16x32xf32> to vector<8x32xf32>
    %cst_19 = arith.constant 0.000000e+00 : f32
    %57 = vector.broadcast %cst_19 : f32 to vector<1x32xf32>
    %58 = tpu.concatenate %57, %56, %57 in 0 : vector<1x32xf32>, vector<8x32xf32>, vector<1x32xf32> -> vector<10x32xf32>
    %59 = vector.extract_strided_slice %58 {offsets = [0, 0], sizes = [8, 32], strides = [1, 1]} : vector<10x32xf32> to vector<8x32xf32>
    %60 = vector.extract_strided_slice %58 {offsets = [1, 0], sizes = [8, 32], strides = [1, 1]} : vector<10x32xf32> to vector<8x32xf32>
    %61 = vector.extract_strided_slice %58 {offsets = [2, 0], sizes = [8, 32], strides = [1, 1]} : vector<10x32xf32> to vector<8x32xf32>
    %62 = tpu.concatenate %59, %60, %61 in 1 : vector<8x32xf32>, vector<8x32xf32>, vector<8x32xf32> -> vector<8x96xf32>
    %63 = tpu.concatenate %55, %62 in 0 : vector<8x96xf32>, vector<8x96xf32> -> vector<16x96xf32>
    %c0_20 = arith.constant 0 : index
    %c0_21 = arith.constant 0 : index
    %64 = vector.load %arg6[%c0_20, %c0_21] : memref<96x32xf32, #tpu.memory_space<vmem>>, vector<96x32xf32>
    %cst_22 = arith.constant dense<0.000000e+00> : vector<16x32xf32>
    %65 = tpu.matmul %63, %64, %cst_22 {dimension_numbers = #tpu.dot_dimension_numbers<[1], [0], [0], [1], [0, 0, 1, 1], [], []>} : vector<16x96xf32>, vector<96x32xf32>, vector<16x32xf32> -> vector<16x32xf32>
    %c0_23 = arith.constant 0 : index
    %c0_24 = arith.constant 0 : index
    %66 = vector.load %arg7[%c0_23, %c0_24] : memref<1x32xf32, #tpu.memory_space<vmem>>, vector<1x32xf32>
    %67 = vector.broadcast %66 : vector<1x32xf32> to vector<16x32xf32>
    %68 = arith.addf %65, %67 : vector<16x32xf32>
    %cst_25 = arith.constant dense<0.000000e+00> : vector<16xf32>
    %69 = vector.multi_reduction <add>, %68, %cst_25 [1] : vector<16x32xf32> to vector<16xf32>
    %70 = vector.shape_cast %69 : vector<16xf32> to vector<16x1xf32>
    %cst_26 = arith.constant 3.200000e+01 : f32
    %71 = vector.broadcast %cst_26 : f32 to vector<16x1xf32>
    %72 = arith.divf %70, %71 : vector<16x1xf32>
    %73 = vector.broadcast %72 : vector<16x1xf32> to vector<16x32xf32>
    %74 = arith.subf %68, %73 : vector<16x32xf32>
    %75 = arith.mulf %74, %74 : vector<16x32xf32>
    %cst_27 = arith.constant dense<0.000000e+00> : vector<16xf32>
    %76 = vector.multi_reduction <add>, %75, %cst_27 [1] : vector<16x32xf32> to vector<16xf32>
    %77 = vector.shape_cast %76 : vector<16xf32> to vector<16x1xf32>
    %cst_28 = arith.constant 3.200000e+01 : f32
    %78 = vector.broadcast %cst_28 : f32 to vector<16x1xf32>
    %79 = arith.divf %77, %78 : vector<16x1xf32>
    %80 = vector.broadcast %72 : vector<16x1xf32> to vector<16x32xf32>
    %81 = arith.subf %68, %80 : vector<16x32xf32>
    %cst_29 = arith.constant 9.99999974E-6 : f32
    %82 = vector.broadcast %cst_29 : f32 to vector<16x1xf32>
    %83 = arith.addf %79, %82 : vector<16x1xf32>
    %84 = math.rsqrt %83 : vector<16x1xf32>
    %85 = vector.broadcast %84 : vector<16x1xf32> to vector<16x32xf32>
    %86 = arith.mulf %81, %85 : vector<16x32xf32>
    %c0_30 = arith.constant 0 : index
    %c0_31 = arith.constant 0 : index
    %87 = vector.load %arg8[%c0_30, %c0_31] : memref<1x32xf32, #tpu.memory_space<vmem>>, vector<1x32xf32>
    %88 = vector.broadcast %87 : vector<1x32xf32> to vector<16x32xf32>
    %89 = arith.mulf %86, %88 : vector<16x32xf32>
    %c0_32 = arith.constant 0 : index
    %c0_33 = arith.constant 0 : index
    %90 = vector.load %arg9[%c0_32, %c0_33] : memref<1x32xf32, #tpu.memory_space<vmem>>, vector<1x32xf32>
    %91 = vector.broadcast %90 : vector<1x32xf32> to vector<16x32xf32>
    %92 = arith.addf %89, %91 : vector<16x32xf32>
    %cst_34 = arith.constant 0.000000e+00 : f32
    %93 = vector.broadcast %cst_34 : f32 to vector<16x32xf32>
    %94 = arith.maximumf %92, %93 : vector<16x32xf32>
    %c0_35 = arith.constant 0 : index
    %c0_36 = arith.constant 0 : index
    %95 = vector.load %arg10[%c0_35, %c0_36] : memref<1x32xf32, #tpu.memory_space<vmem>>, vector<1x32xf32>
    %cst_37 = arith.constant dense<0.000000e+00> : vector<1x16xf32>
    %96 = tpu.matmul %95, %94, %cst_37 {dimension_numbers = #tpu.dot_dimension_numbers<[1], [1], [0], [0], [0, 0, 1, 0], [], []>} : vector<1x32xf32>, vector<16x32xf32>, vector<1x16xf32> -> vector<1x16xf32>
    %c0_38 = arith.constant 0 : index
    %c0_39 = arith.constant 0 : index
    %97 = vector.load %arg11[%c0_38, %c0_39] : memref<1x1xf32, #tpu.memory_space<vmem>>, vector<1x1xf32>
    %98 = vector.broadcast %97 : vector<1x1xf32> to vector<1x16xf32>
    %99 = arith.addf %96, %98 : vector<1x16xf32>
    %cst_40 = arith.constant 0.000000e+00 : f32
    %100 = vector.broadcast %cst_40 : f32 to vector<1x16xf32>
    %101 = arith.maximumf %99, %100 : vector<1x16xf32>
    %102 = vector.extract_strided_slice %101 {offsets = [0, 0], sizes = [1, 8], strides = [1, 1]} : vector<1x16xf32> to vector<1x8xf32>
    %c0_41 = arith.constant 0 : index
    %c0_42 = arith.constant 0 : index
    %c0_43 = arith.constant 0 : index
    %103 = vector.load %arg12[%c0_41, %c0_42, %c0_43] : memref<2x1x8xf32, #tpu.memory_space<vmem>>, vector<1x1x8xf32>
    %104 = vector.shape_cast %103 : vector<1x1x8xf32> to vector<1x8xf32>
    %105 = vector.shape_cast %102 : vector<1x8xf32> to vector<1x1x8xf32>
    tpu.vector_store %arg12[%c0_41, %c0_42, %c0_43], %105 {strides = array<i32>} : memref<2x1x8xf32, #tpu.memory_space<vmem>>, vector<1x1x8xf32>,
    %106 = vector.extract_strided_slice %101 {offsets = [0, 8], sizes = [1, 8], strides = [1, 1]} : vector<1x16xf32> to vector<1x8xf32>
    %c1 = arith.constant 1 : index
    %c0_44 = arith.constant 0 : index
    %c0_45 = arith.constant 0 : index
    %107 = vector.load %arg12[%c1, %c0_44, %c0_45] : memref<2x1x8xf32, #tpu.memory_space<vmem>>, vector<1x1x8xf32>
    %108 = vector.shape_cast %107 : vector<1x1x8xf32> to vector<1x8xf32>
    %109 = vector.shape_cast %106 : vector<1x8xf32> to vector<1x1x8xf32>
    tpu.vector_store %arg12[%c1, %c0_44, %c0_45], %109 {strides = array<i32>} : memref<2x1x8xf32, #tpu.memory_space<vmem>>, vector<1x1x8xf32>,
    return
  }
  func.func @transform_0(%arg0: i32) -> (i32, i32, i32) {
    %c0_i32 = arith.constant 0 : i32
    %c0_i32_0 = arith.constant 0 : i32
    %c0_i32_1 = arith.constant 0 : i32
    return %arg0, %c0_i32, %c0_i32_0 : i32, i32, i32
  }
  func.func @transform_1(%arg0: i32) -> (i32, i32) {
    %c0_i32 = arith.constant 0 : i32
    %c0_i32_0 = arith.constant 0 : i32
    %c0_i32_1 = arith.constant 0 : i32
    return %c0_i32, %c0_i32_0 : i32, i32
  }
  func.func @transform_2(%arg0: i32) -> (i32, i32) {
    %c0_i32 = arith.constant 0 : i32
    %c0_i32_0 = arith.constant 0 : i32
    %c0_i32_1 = arith.constant 0 : i32
    return %c0_i32, %c0_i32_0 : i32, i32
  }
  func.func @transform_3(%arg0: i32) -> (i32, i32) {
    %c0_i32 = arith.constant 0 : i32
    %c0_i32_0 = arith.constant 0 : i32
    %c0_i32_1 = arith.constant 0 : i32
    return %c0_i32, %c0_i32_0 : i32, i32
  }
  func.func @transform_4(%arg0: i32) -> (i32, i32) {
    %c0_i32 = arith.constant 0 : i32
    %c0_i32_0 = arith.constant 0 : i32
    %c0_i32_1 = arith.constant 0 : i32
    return %c0_i32, %c0_i32_0 : i32, i32
  }
  func.func @transform_5(%arg0: i32) -> (i32, i32) {
    %c0_i32 = arith.constant 0 : i32
    %c0_i32_0 = arith.constant 0 : i32
    %c0_i32_1 = arith.constant 0 : i32
    return %c0_i32, %c0_i32_0 : i32, i32
  }
  func.func @transform_6(%arg0: i32) -> (i32, i32) {
    %c0_i32 = arith.constant 0 : i32
    %c0_i32_0 = arith.constant 0 : i32
    %c0_i32_1 = arith.constant 0 : i32
    return %c0_i32, %c0_i32_0 : i32, i32
  }
  func.func @transform_7(%arg0: i32) -> (i32, i32) {
    %c0_i32 = arith.constant 0 : i32
    %c0_i32_0 = arith.constant 0 : i32
    %c0_i32_1 = arith.constant 0 : i32
    return %c0_i32, %c0_i32_0 : i32, i32
  }
  func.func @transform_8(%arg0: i32) -> (i32, i32) {
    %c0_i32 = arith.constant 0 : i32
    %c0_i32_0 = arith.constant 0 : i32
    %c0_i32_1 = arith.constant 0 : i32
    return %c0_i32, %c0_i32_0 : i32, i32
  }
  func.func @transform_9(%arg0: i32) -> (i32, i32) {
    %c0_i32 = arith.constant 0 : i32
    %c0_i32_0 = arith.constant 0 : i32
    %c0_i32_1 = arith.constant 0 : i32
    return %c0_i32, %c0_i32_0 : i32, i32
  }
  func.func @transform_10(%arg0: i32) -> (i32, i32) {
    %c0_i32 = arith.constant 0 : i32
    %c0_i32_0 = arith.constant 0 : i32
    %c0_i32_1 = arith.constant 0 : i32
    return %c0_i32, %c0_i32_0 : i32, i32
  }
  func.func @transform_11(%arg0: i32) -> (i32, i32, i32) {
    %c0_i32 = arith.constant 0 : i32
    %c0_i32_0 = arith.constant 0 : i32
    %c0_i32_1 = arith.constant 0 : i32
    return %arg0, %c0_i32, %c0_i32_0 : i32, i32, i32
  }
}

</mosaic_0001>

<llo_original>
// kernel: tpu_custom_call.1
$region0: #{tpu_custom_call.1}
  #allocation0 [shape = 'u32[]', space=smem, size = 0x4, offset = 0x4, fixed_abs, tag = 'smem constant byte address 0x4 - core index']
  #allocation1 [shape = 'u32[144,128]{1,0:T(1,128)}', space=vmem, size = 0x12000, scoped, tag = 'internal scratch']
  #allocation2 [shape = 'f32[1,1]{1,0:T(1,128)S(1)}', space=vmem, size = 0x200, scoped, tag = 'scoped memory for tpu_custom_call.1']
  %s0 = inlined_call_operand.vmem [shape: f32[2,8,32], index: 0, kind: input, shape index: {}]
  %s1 = inlined_call_operand.vmem [shape: f32[96,32], index: 1, kind: input, shape index: {}]
  %s2 = inlined_call_operand.vmem [shape: f32[1,32], index: 2, kind: input, shape index: {}]
  %s3 = inlined_call_operand.vmem [shape: f32[1,32], index: 3, kind: input, shape index: {}]
  %s4 = inlined_call_operand.vmem [shape: f32[1,32], index: 4, kind: input, shape index: {}]
  %s5 = inlined_call_operand.vmem [shape: f32[96,32], index: 5, kind: input, shape index: {}]
  %s6 = inlined_call_operand.vmem [shape: f32[1,32], index: 6, kind: input, shape index: {}]
  %s7 = inlined_call_operand.vmem [shape: f32[1,32], index: 7, kind: input, shape index: {}]
  %s8 = inlined_call_operand.vmem [shape: f32[1,32], index: 8, kind: input, shape index: {}]
  %s9 = inlined_call_operand.vmem [shape: f32[1,32], index: 9, kind: input, shape index: {}]
  %s10 = inlined_call_operand.<no memory space> [shape: f32[1,1], index: 10, kind: input, shape index: {}]
  %s11 = inlined_call_operand.hbm [shape: f32[2,1,8], index: 11, kind: output, shape index: {}]
  %s12 = sld [smem:[#allocation0]]
  $region54: #{tpu_custom_call.1} parent=0
    _
  %s14 = ssub.s32 1, %s12
  %s15 = scalar_select 0, %s14, %s12
  %v16 = vstv %s10
  %17 = vst [vmem:[#allocation2] sm:$0x1] %v16
  $region1: #{tpu_custom_call.1} parent=0
    #allocation3 [shape = 'u8[1024]{0}', space=vmem, size = 0x400, scoped, tag = 'output window, operand 0, single buffered']
    #allocation4 [shape = 's32[1]{0}', space=sflag, size = 0x4, scoped, tag = 'scoped memory for tpu_custom_call.1']
    %18 = vsyncpa [#allocation4], 0
    // Predicated region
    $region2: #{tpu_custom_call.1} parent=1 // pred_check
      _
    $region3: #{tpu_custom_call.1} parent=1 // pred_check_branch
      %20 = sbr.rel (0) target = $region5
    $region4: #{tpu_custom_call.1} parent=1 // pred_region
      _
    $region5: #{tpu_custom_call.1} parent=1 // pred_fallthru
      _
    // Predicated region
    $region6: #{tpu_custom_call.1} parent=1 // pred_check
      _
    $region7: #{tpu_custom_call.1} parent=1 // pred_check_branch
      %22 = sbr.rel (0) target = $region9
    $region8: #{tpu_custom_call.1} parent=1 // pred_region
      _
    $region9: #{tpu_custom_call.1} parent=1 // pred_fallthru
      _
    // Predicated region
    $region10: #{tpu_custom_call.1} parent=1 // pred_check
      _
    $region11: #{tpu_custom_call.1} parent=1 // pred_check_branch
      %24 = sbr.rel (0) target = $region13
    $region12: #{tpu_custom_call.1} parent=1 // pred_region
      _
    $region13: #{tpu_custom_call.1} parent=1 // pred_fallthru
      _
    // Predicated region
    $region14: #{tpu_custom_call.1} parent=1 // pred_check
      _
    $region15: #{tpu_custom_call.1} parent=1 // pred_check_branch
      %26 = sbr.rel (0) target = $region17
    $region16: #{tpu_custom_call.1} parent=1 // pred_region
      _
    $region17: #{tpu_custom_call.1} parent=1 // pred_fallthru
      _
    // Predicated region
    $region18: #{tpu_custom_call.1} parent=1 // pred_check
      _
    $region19: #{tpu_custom_call.1} parent=1 // pred_check_branch
      %28 = sbr.rel (0) target = $region21
    $region20: #{tpu_custom_call.1} parent=1 // pred_region
      _
    $region21: #{tpu_custom_call.1} parent=1 // pred_fallthru
      _
    // Predicated region
    $region22: #{tpu_custom_call.1} parent=1 // pred_check
      _
    $region23: #{tpu_custom_call.1} parent=1 // pred_check_branch
      %30 = sbr.rel (0) target = $region25
    $region24: #{tpu_custom_call.1} parent=1 // pred_region
      _
    $region25: #{tpu_custom_call.1} parent=1 // pred_fallthru
      _
    // Predicated region
    $region26: #{tpu_custom_call.1} parent=1 // pred_check
      _
    $region27: #{tpu_custom_call.1} parent=1 // pred_check_branch
      %32 = sbr.rel (0) target = $region29
    $region28: #{tpu_custom_call.1} parent=1 // pred_region
      _
    $region29: #{tpu_custom_call.1} parent=1 // pred_fallthru
      _
    // Predicated region
    $region30: #{tpu_custom_call.1} parent=1 // pred_check
      _
    $region31: #{tpu_custom_call.1} parent=1 // pred_check_branch
      %34 = sbr.rel (0) target = $region33
    $region32: #{tpu_custom_call.1} parent=1 // pred_region
      _
    $region33: #{tpu_custom_call.1} parent=1 // pred_fallthru
      _
    // Predicated region
    $region34: #{tpu_custom_call.1} parent=1 // pred_check
      _
    $region35: #{tpu_custom_call.1} parent=1 // pred_check_branch
      %36 = sbr.rel (0) target = $region37
    $region36: #{tpu_custom_call.1} parent=1 // pred_region
      _
    $region37: #{tpu_custom_call.1} parent=1 // pred_fallthru
      _
    // Predicated region
    $region38: #{tpu_custom_call.1} parent=1 // pred_check
      _
    $region39: #{tpu_custom_call.1} parent=1 // pred_check_branch
      %38 = sbr.rel (0) target = $region41
    $region40: #{tpu_custom_call.1} parent=1 // pred_region
      _
    $region41: #{tpu_custom_call.1} parent=1 // pred_fallthru
      _
    // Predicated region
    $region42: #{tpu_custom_call.1} parent=1 // pred_check
      _
    $region43: #{tpu_custom_call.1} parent=1 // pred_check_branch
      %40 = sbr.rel (0) target = $region45
    $region44: #{tpu_custom_call.1} parent=1 // pred_region
      _
    $region45: #{tpu_custom_call.1} parent=1 // pred_fallthru
      _
    %v41 = vld [vmem:[%s0] sm:$0xff]
    %v42 = vld [vmem:[%s0 + $0x8] sm:$0xff]
    %v44 = vrot.slane %v41, 7
    %vm46 = vcmask 1040384
    %v47 = vsel %vm46, 0.0, %v44
    %v48 = vsel %vm46, %v44, 0.0
    %vm51 = vcmask 1046528
    %v52 = vrot.slane %v47, 1
    %v53 = vrot.slane %v48, 1
    %v54 = vsel %vm51, %v52, %v53
    %55 = vrot.lane.b32.xlu0 %v54, 32
    %v56 = vpop.permute.xlu0 %55
    %vm58 = vcmask 1045504
    %v59 = vrot.slane %v47, 2
    %v60 = vrot.slane %v48, 2
    %v61 = vsel %vm58, %v59, %v60
    %62 = vrot.lane.b32.xlu0 %v61, 64
    %v63 = vpop.permute.xlu0 %62
    %vm65 = vcmask 261120
    %v66 = vsel %vm65, %v47, %v56
    %vm67 = vcmask 523264
    %v68 = vsel %vm67, %v66, %v63
    %v70 = vrot.slane %v42, 7
    %v72 = vsel %vm46, 0.0, %v70
    %v73 = vsel %vm46, %v70, 0.0
    %v76 = vrot.slane %v72, 1
    %v77 = vrot.slane %v73, 1
    %v78 = vsel %vm51, %v76, %v77
    %79 = vrot.lane.b32.xlu0 %v78, 32
    %v80 = vpop.permute.xlu0 %79
    %v82 = vrot.slane %v72, 2
    %v83 = vrot.slane %v73, 2
    %v84 = vsel %vm58, %v82, %v83
    %85 = vrot.lane.b32.xlu0 %v84, 64
    %v86 = vpop.permute.xlu0 %85
    %v88 = vsel %vm65, %v72, %v80
    %v89 = vsel %vm67, %v88, %v86
    %v90 = vld [vmem:[%s1] sm:$0xff]
    %v91 = vld [vmem:[%s1 + $0x8] sm:$0xff]
    %v92 = vld [vmem:[%s1 + $0x10] sm:$0xff]
    %v93 = vld [vmem:[%s1 + $0x18] sm:$0xff]
    %v94 = vld [vmem:[%s1 + $0x20] sm:$0xff]
    %v95 = vld [vmem:[%s1 + $0x28] sm:$0xff]
    %v96 = vld [vmem:[%s1 + $0x30] sm:$0xff]
    %v97 = vld [vmem:[%s1 + $0x38] sm:$0xff]
    %v98 = vld [vmem:[%s1 + $0x40] sm:$0xff]
    %v99 = vld [vmem:[%s1 + $0x48] sm:$0xff]
    %v100 = vld [vmem:[%s1 + $0x50] sm:$0xff]
    %v101 = vld [vmem:[%s1 + $0x58] sm:$0xff]
    %v102 = vld [vmem:[%s2] sm:$0x1]
    %v104 = vlaneseq
    %v105 = vshrl.u32 %v104, 7
    %v106 = vsub.s32 0, %v105
    %v107 = vrot.slane %v102, %v106
    %vm109 = vcmask 785408
    %v111 = vsel %vm109, %v68, 0
    %v114 = vsel %vm109, %v89, 0
    %116 = vmatprep.subr.mxu0 0.0
    %117 = vmatpush1.msra.mxu0 %v90
    %118 = vmatprep.subr.mxu0 0.0
    %119 = vmatpush1.msra.mxu0 %v91
    %120 = vmatprep.subr.mxu0 0.0
    %121 = vmatpush1.msra.mxu0 %v92
    %122 = vmatprep.subr.mxu0 0.0
    %123 = vmatpush1.msra.mxu0 %v93
    %124 = vmatprep.subr.mxu0 0.0
    %125 = vmatpush1.msra.mxu0 %v94
    %126 = vmatprep.subr.mxu0 0.0
    %127 = vmatpush1.msra.mxu0 %v95
    %128 = vmatprep.subr.mxu0 0.0
    %129 = vmatpush1.msra.mxu0 %v96
    %130 = vmatprep.subr.mxu0 0.0
    %131 = vmatpush1.msra.mxu0 %v97
    %132 = vmatprep.subr.mxu0 0.0
    %133 = vmatpush1.msra.mxu0 %v98
    %134 = vmatprep.subr.mxu0 0.0
    %135 = vmatpush1.msra.mxu0 %v99
    %136 = vmatprep.subr.mxu0 0.0
    %137 = vmatpush1.msra.mxu0 %v100
    %138 = vmatprep.subr.mxu0 0.0
    %139 = vmatpush1.msra.mxu0 %v101
    %140 = vmatprep.subr.mxu0 0.0
    %141 = vmatpush1.msra.mxu0 0.0
    %142 = vmatprep.subr.mxu0 0.0
    %143 = vmatpush1.msra.mxu0 0.0
    %144 = vmatprep.subr.mxu0 0.0
    %145 = vmatpush1.msra.mxu0 0.0
    %146 = vmatprep.subr.mxu0 0.0
    %147 = vmatpush1.msra.mxu0 0.0
    %148 = vmatprep.subr.mxu0 0.0
    %149 = vmatpush1.msra.mxu0 0.0
    %150 = vmatprep.subr.mxu0 0.0
    %151 = vmatpush1.msra.mxu0 0.0
    %152 = vmatprep.subr.mxu0 0.0
    %153 = vmatpush1.msra.mxu0 0.0
    %154 = vmatprep.subr.mxu0 0.0
    %155 = vmatpush1.msra.mxu0 0.0
    %156 = vmatprep.subr.mxu0 0.0
    %157 = vmatpush1.msra.mxu0 0.0
    %158 = vmatprep.subr.mxu0 0.0
    %159 = vmatpush1.msra.mxu0 0.0
    %160 = vmatprep.subr.mxu0 0.0
    %161 = vmatpush1.msra.mxu0 0.0
    %162 = vmatprep.subr.mxu0 0.0
    %163 = vmatpush1.msra.mxu0 0.0
    %164 = vmatprep.subr.mxu0 0.0
    %165 = vmatpush1.msra.mxu0 0.0
    %166 = vmatprep.subr.mxu0 0.0
    %167 = vmatpush1.msra.mxu0 0.0
    %168 = vmatprep.subr.mxu0 0.0
    %169 = vmatpush1.msra.mxu0 0.0
    %170 = vmatprep.subr.mxu0 0.0
    %171 = vmatpush1.msra.mxu0 0.0
    %172 = vmatprep.subr.mxu0 0.0
    %173 = vmatpush1.msra.mxu0 0.0
    %174 = vmatprep.subr.mxu0 0.0
    %175 = vmatpush1.msra.mxu0 0.0
    %176 = vmatprep.subr.mxu0 0.0
    %177 = vmatpush1.msra.mxu0 0.0
    %178 = vmatprep.subr.mxu0 0.0
    %179 = vmatpush1.msra.mxu0 0.0
    %180 = vmatprep.mubr.f32.mxu0 0.0
    %181 = vmatmul.mubr.f32.gmra.mrb[0].mxu0 %v111
    %v182 = vpop.f32.mrb[0].mxu0
    %v183 = vadd.f32 %v107, %v182
    %v184 = vpop.f32.mrb[0].mxu0
    %185 = vmatprep.mubr.f32.mxu0 0.0
    %186 = vmatmul.mubr.f32.gmra.mrb[0].mxu0 %v114
    %v187 = vpop.f32.mrb[0].mxu0
    %v188 = vadd.f32 %v107, %v187
    %v189 = vpop.f32.mrb[0].mxu0
    %190 = vdwg.mxu0
    %v191 = vsel %vm65, %v183, 0.0
    %192 = vadd.xlane.f32.xlu0 %v191
    %v193 = vpop.xlane.xlu0 %192
    %v194 = vsel %vm65, %v188, 0.0
    %195 = vadd.xlane.f32.xlu0 %v194
    %v196 = vpop.xlane.xlu0 %195
    %v197 = vrcp.pop 32.0
    %v198 = vmul.f32 %v193, %v197
    %v199 = vmul.f32 %v196, %v197
    %v200 = vsub.f32 %v183, %v198
    %v201 = vsub.f32 %v188, %v199
    %v202 = vmul.f32 %v200, %v200
    %v203 = vmul.f32 %v201, %v201
    %v204 = vsel %vm65, %v202, 0.0
    %205 = vadd.xlane.f32.xlu0 %v204
    %v206 = vpop.xlane.xlu0 %205
    %v207 = vsel %vm65, %v203, 0.0
    %208 = vadd.xlane.f32.xlu0 %v207
    %v209 = vpop.xlane.xlu0 %208
    %v210 = vmul.f32 %v206, %v197
    %v211 = vmul.f32 %v209, %v197
    %v212 = vadd.f32 %v210, 1e-05
    %v213 = vadd.f32 %v211, 1e-05
    %v214 = vrsqrt.pop %v212
    %v215 = vrsqrt.pop %v213
    %v216 = vmul.f32 %v200, %v214
    %v217 = vmul.f32 %v201, %v215
    %v218 = vld [vmem:[%s3] sm:$0x1]
    %v220 = vlaneseq
    %v221 = vshrl.u32 %v220, 7
    %v222 = vsub.s32 0, %v221
    %v223 = vrot.slane %v218, %v222
    %v225 = vmul.f32 %v216, %v223
    %v226 = vmul.f32 %v217, %v223
    %v227 = vld [vmem:[%s4] sm:$0x1]
    %v229 = vlaneseq
    %v230 = vshrl.u32 %v229, 7
    %v231 = vsub.s32 0, %v230
    %v232 = vrot.slane %v227, %v231
    %v234 = vadd.f32 %v225, %v232
    %v235 = vadd.f32 %v226, %v232
    %v236 = vmax.f32 %v234, 0.0
    %v237 = vmax.f32 %v235, 0.0
    %v239 = vrot.slane %v236, 7
    %v241 = vsel %vm46, 0.0, %v239
    %v242 = vsel %vm46, %v239, 0.0
    %v245 = vrot.slane %v241, 1
    %v246 = vrot.slane %v242, 1
    %v247 = vsel %vm51, %v245, %v246
    %248 = vrot.lane.b32.xlu0 %v247, 32
    %v249 = vpop.permute.xlu0 %248
    %v251 = vrot.slane %v241, 2
    %v252 = vrot.slane %v242, 2
    %v253 = vsel %vm58, %v251, %v252
    %254 = vrot.lane.b32.xlu0 %v253, 64
    %v255 = vpop.permute.xlu0 %254
    %v257 = vsel %vm65, %v241, %v249
    %v258 = vsel %vm67, %v257, %v255
    %v260 = vrot.slane %v237, 7
    %v262 = vsel %vm46, 0.0, %v260
    %v263 = vsel %vm46, %v260, 0.0
    %v266 = vrot.slane %v262, 1
    %v267 = vrot.slane %v263, 1
    %v268 = vsel %vm51, %v266, %v267
    %269 = vrot.lane.b32.xlu0 %v268, 32
    %v270 = vpop.permute.xlu0 %269
    %v272 = vrot.slane %v262, 2
    %v273 = vrot.slane %v263, 2
    %v274 = vsel %vm58, %v272, %v273
    %275 = vrot.lane.b32.xlu0 %v274, 64
    %v276 = vpop.permute.xlu0 %275
    %v278 = vsel %vm65, %v262, %v270
    %v279 = vsel %vm67, %v278, %v276
    %v280 = vld [vmem:[%s5] sm:$0xff]
    %v281 = vld [vmem:[%s5 + $0x8] sm:$0xff]
    %v282 = vld [vmem:[%s5 + $0x10] sm:$0xff]
    %v283 = vld [vmem:[%s5 + $0x18] sm:$0xff]
    %v284 = vld [vmem:[%s5 + $0x20] sm:$0xff]
    %v285 = vld [vmem:[%s5 + $0x28] sm:$0xff]
    %v286 = vld [vmem:[%s5 + $0x30] sm:$0xff]
    %v287 = vld [vmem:[%s5 + $0x38] sm:$0xff]
    %v288 = vld [vmem:[%s5 + $0x40] sm:$0xff]
    %v289 = vld [vmem:[%s5 + $0x48] sm:$0xff]
    %v290 = vld [vmem:[%s5 + $0x50] sm:$0xff]
    %v291 = vld [vmem:[%s5 + $0x58] sm:$0xff]
    %v292 = vld [vmem:[%s6] sm:$0x1]
    %v294 = vlaneseq
    %v295 = vshrl.u32 %v294, 7
    %v296 = vsub.s32 0, %v295
    %v297 = vrot.slane %v292, %v296
    %v300 = vsel %vm109, %v258, 0
    %v303 = vsel %vm109, %v279, 0
    %305 = vmatprep.subr.mxu0 0.0
    %306 = vmatpush1.msra.mxu0 %v280
    %307 = vmatprep.subr.mxu0 0.0
    %308 = vmatpush1.msra.mxu0 %v281
    %309 = vmatprep.subr.mxu0 0.0
    %310 = vmatpush1.msra.mxu0 %v282
    %311 = vmatprep.subr.mxu0 0.0
    %312 = vmatpush1.msra.mxu0 %v283
    %313 = vmatprep.subr.mxu0 0.0
    %314 = vmatpush1.msra.mxu0 %v284
    %315 = vmatprep.subr.mxu0 0.0
    %316 = vmatpush1.msra.mxu0 %v285
    %317 = vmatprep.subr.mxu0 0.0
    %318 = vmatpush1.msra.mxu0 %v286
    %319 = vmatprep.subr.mxu0 0.0
    %320 = vmatpush1.msra.mxu0 %v287
    %321 = vmatprep.subr.mxu0 0.0
    %322 = vmatpush1.msra.mxu0 %v288
    %323 = vmatprep.subr.mxu0 0.0
    %324 = vmatpush1.msra.mxu0 %v289
    %325 = vmatprep.subr.mxu0 0.0
    %326 = vmatpush1.msra.mxu0 %v290
    %327 = vmatprep.subr.mxu0 0.0
    %328 = vmatpush1.msra.mxu0 %v291
    %329 = vmatprep.subr.mxu0 0.0
    %330 = vmatpush1.msra.mxu0 0.0
    %331 = vmatprep.subr.mxu0 0.0
    %332 = vmatpush1.msra.mxu0 0.0
    %333 = vmatprep.subr.mxu0 0.0
    %334 = vmatpush1.msra.mxu0 0.0
    %335 = vmatprep.subr.mxu0 0.0
    %336 = vmatpush1.msra.mxu0 0.0
    %337 = vmatprep.subr.mxu0 0.0
    %338 = vmatpush1.msra.mxu0 0.0
    %339 = vmatprep.subr.mxu0 0.0
    %340 = vmatpush1.msra.mxu0 0.0
    %341 = vmatprep.subr.mxu0 0.0
    %342 = vmatpush1.msra.mxu0 0.0
    %343 = vmatprep.subr.mxu0 0.0
    %344 = vmatpush1.msra.mxu0 0.0
    %345 = vmatprep.subr.mxu0 0.0
    %346 = vmatpush1.msra.mxu0 0.0
    %347 = vmatprep.subr.mxu0 0.0
    %348 = vmatpush1.msra.mxu0 0.0
    %349 = vmatprep.subr.mxu0 0.0
    %350 = vmatpush1.msra.mxu0 0.0
    %351 = vmatprep.subr.mxu0 0.0
    %352 = vmatpush1.msra.mxu0 0.0
    %353 = vmatprep.subr.mxu0 0.0
    %354 = vmatpush1.msra.mxu0 0.0
    %355 = vmatprep.subr.mxu0 0.0
    %356 = vmatpush1.msra.mxu0 0.0
    %357 = vmatprep.subr.mxu0 0.0
    %358 = vmatpush1.msra.mxu0 0.0
    %359 = vmatprep.subr.mxu0 0.0
    %360 = vmatpush1.msra.mxu0 0.0
    %361 = vmatprep.subr.mxu0 0.0
    %362 = vmatpush1.msra.mxu0 0.0
    %363 = vmatprep.subr.mxu0 0.0
    %364 = vmatpush1.msra.mxu0 0.0
    %365 = vmatprep.subr.mxu0 0.0
    %366 = vmatpush1.msra.mxu0 0.0
    %367 = vmatprep.subr.mxu0 0.0
    %368 = vmatpush1.msra.mxu0 0.0
    %369 = vmatprep.mubr.f32.mxu0 0.0
    %370 = vmatmul.mubr.f32.gmra.mrb[0].mxu0 %v300
    %v371 = vpop.f32.mrb[0].mxu0
    %v372 = vadd.f32 %v297, %v371
    %v373 = vpop.f32.mrb[0].mxu0
    %374 = vmatprep.mubr.f32.mxu0 0.0
    %375 = vmatmul.mubr.f32.gmra.mrb[0].mxu0 %v303
    %v376 = vpop.f32.mrb[0].mxu0
    %v377 = vadd.f32 %v297, %v376
    %v378 = vpop.f32.mrb[0].mxu0
    %379 = vdwg.mxu0
    %v380 = vsel %vm65, %v372, 0.0
    %381 = vadd.xlane.f32.xlu0 %v380
    %v382 = vpop.xlane.xlu0 %381
    %v383 = vsel %vm65, %v377, 0.0
    %384 = vadd.xlane.f32.xlu0 %v383
    %v385 = vpop.xlane.xlu0 %384
    %v386 = vmul.f32 %v382, %v197
    %v387 = vmul.f32 %v385, %v197
    %v388 = vsub.f32 %v372, %v386
    %v389 = vsub.f32 %v377, %v387
    %v390 = vmul.f32 %v388, %v388
    %v391 = vmul.f32 %v389, %v389
    %v392 = vsel %vm65, %v390, 0.0
    %393 = vadd.xlane.f32.xlu0 %v392
    %v394 = vpop.xlane.xlu0 %393
    %v395 = vsel %vm65, %v391, 0.0
    %396 = vadd.xlane.f32.xlu0 %v395
    %v397 = vpop.xlane.xlu0 %396
    %v398 = vmul.f32 %v394, %v197
    %v399 = vmul.f32 %v397, %v197
    %v400 = vadd.f32 %v398, 1e-05
    %v401 = vadd.f32 %v399, 1e-05
    %v402 = vrsqrt.pop %v400
    %v403 = vrsqrt.pop %v401
    %v404 = vmul.f32 %v388, %v402
    %v405 = vmul.f32 %v389, %v403
    %v406 = vld [vmem:[%s7] sm:$0x1]
    %v408 = vlaneseq
    %v409 = vshrl.u32 %v408, 7
    %v410 = vsub.s32 0, %v409
    %v411 = vrot.slane %v406, %v410
    %v413 = vmul.f32 %v404, %v411
    %v414 = vmul.f32 %v405, %v411
    %v415 = vld [vmem:[%s8] sm:$0x1]
    %v417 = vlaneseq
    %v418 = vshrl.u32 %v417, 7
    %v419 = vsub.s32 0, %v418
    %v420 = vrot.slane %v415, %v419
    %v422 = vadd.f32 %v413, %v420
    %v423 = vadd.f32 %v414, %v420
    %v424 = vmax.f32 %v422, 0.0
    %v425 = vmax.f32 %v423, 0.0
    %v426 = vld [vmem:[%s9] sm:$0x1]
    %v427 = vld [vmem:[#allocation2] sm:$0x1]
    %429 = vset.pattern.permute.xlu0 0
    %430 = vperm.xlu0 %429, %v427
    %v431 = vpop.permute.xlu0 %430
    %v433 = vlaneseq
    %v434 = vshrl.u32 %v433, 7
    %v435 = vsub.s32 0, %v434
    %v436 = vrot.slane %v431, %v435
    %v438 = vsel %vm65, %v426, 0
    %v441 = vsel %vm65, %v424, 0
    %v444 = vsel %vm65, %v425, 0
    %446 = vmatprep.subr.mxu0 0.0
    %447 = vmatpush1.xpose.msra.mxu0 %v441
    %448 = vmatprep.subr.mxu0 0.0
    %449 = vmatpush1.xpose.msra.mxu0 %v444
    %450 = vmatprep.subr.mxu0 0.0
    %451 = vmatpush1.xpose.msra.mxu0 0.0
    %452 = vmatprep.subr.mxu0 0.0
    %453 = vmatpush1.xpose.msra.mxu0 0.0
    %454 = vmatprep.subr.mxu0 0.0
    %455 = vmatpush1.xpose.msra.mxu0 0.0
    %456 = vmatprep.subr.mxu0 0.0
    %457 = vmatpush1.xpose.msra.mxu0 0.0
    %458 = vmatprep.subr.mxu0 0.0
    %459 = vmatpush1.xpose.msra.mxu0 0.0
    %460 = vmatprep.subr.mxu0 0.0
    %461 = vmatpush1.xpose.msra.mxu0 0.0
    %462 = vmatprep.subr.mxu0 0.0
    %463 = vmatpush1.xpose.msra.mxu0 0.0
    %464 = vmatprep.subr.mxu0 0.0
    %465 = vmatpush1.xpose.msra.mxu0 0.0
    %466 = vmatprep.subr.mxu0 0.0
    %467 = vmatpush1.xpose.msra.mxu0 0.0
    %468 = vmatprep.subr.mxu0 0.0
    %469 = vmatpush1.xpose.msra.mxu0 0.0
    %470 = vmatprep.subr.mxu0 0.0
    %471 = vmatpush1.xpose.msra.mxu0 0.0
    %472 = vmatprep.subr.mxu0 0.0
    %473 = vmatpush1.xpose.msra.mxu0 0.0
    %474 = vmatprep.subr.mxu0 0.0
    %475 = vmatpush1.xpose.msra.mxu0 0.0
    %476 = vmatprep.subr.mxu0 0.0
    %477 = vmatpush1.xpose.msra.mxu0 0.0
    %478 = vmatprep.subr.mxu0 0.0
    %479 = vmatpush1.xpose.msra.mxu0 0.0
    %480 = vmatprep.subr.mxu0 0.0
    %481 = vmatpush1.xpose.msra.mxu0 0.0
    %482 = vmatprep.subr.mxu0 0.0
    %483 = vmatpush1.xpose.msra.mxu0 0.0
    %484 = vmatprep.subr.mxu0 0.0
    %485 = vmatpush1.xpose.msra.mxu0 0.0
    %486 = vmatprep.subr.mxu0 0.0
    %487 = vmatpush1.xpose.msra.mxu0 0.0
    %488 = vmatprep.subr.mxu0 0.0
    %489 = vmatpush1.xpose.msra.mxu0 0.0
    %490 = vmatprep.subr.mxu0 0.0
    %491 = vmatpush1.xpose.msra.mxu0 0.0
    %492 = vmatprep.subr.mxu0 0.0
    %493 = vmatpush1.xpose.msra.mxu0 0.0
    %494 = vmatprep.subr.mxu0 0.0
    %495 = vmatpush1.xpose.msra.mxu0 0.0
    %496 = vmatprep.subr.mxu0 0.0
    %497 = vmatpush1.xpose.msra.mxu0 0.0
    %498 = vmatprep.subr.mxu0 0.0
    %499 = vmatpush1.xpose.msra.mxu0 0.0
    %500 = vmatprep.subr.mxu0 0.0
    %501 = vmatpush1.xpose.msra.mxu0 0.0
    %502 = vmatprep.subr.mxu0 0.0
    %503 = vmatpush1.xpose.msra.mxu0 0.0
    %504 = vmatprep.subr.mxu0 0.0
    %505 = vmatpush1.xpose.msra.mxu0 0.0
    %506 = vmatprep.subr.mxu0 0.0
    %507 = vmatpush1.xpose.msra.mxu0 0.0
    %508 = vmatprep.subr.mxu0 0.0
    %509 = vmatpush1.xpose.msra.mxu0 0.0
    %510 = vmatprep.mubr.f32.mxu0 0.0
    %511 = vmatmul.mubr.f32.gmra.mrb[0].mxu0 %v438
    %v512 = vpop.f32.mrb[0].mxu0
    %v513 = vadd.f32 %v436, %v512
    %v514 = vpop.f32.mrb[0].mxu0
    %515 = vdwg.mxu0
    %v516 = vmax.f32 %v513, 0.0
    %vm517 = vcmask 57344
    %518 = vst.msk [vmem:[#allocation3] sm:$0x1] %vm517, %v516
    %520 = vrot.lane.b32.xlu0 %v516, 120
    %v521 = vpop.permute.xlu0 %520
    %s523 = scalar_lea.vmem [#allocation3], 1
    %524 = vst.msk [vmem:[%s523] sm:$0x1] %vm517, %v521
    // Predicated region
    $region46: #{tpu_custom_call.1} parent=1 // pred_check
      _
    $region47: #{tpu_custom_call.1} parent=1 // pred_check_branch
      %526 = sbr.rel (0) target = $region49
    $region48: #{tpu_custom_call.1} parent=1 // pred_region
      %s528 = ssub.s32 32, 32
      %529 = vsyncadd [#allocation4], %s528
      %s530 = sshll.u32 [#allocation3], 4
      %s531 = int_to_ptr.vmem [resolvable:$true] %s530
      %536 = dma.vmem_to_hbm [thread:$0]  %s531, 32, %s11, [#allocation4], 16, 16, 1
    $region49: #{tpu_custom_call.1} parent=1 // pred_fallthru
      _
    // Predicated region
    $region50: #{tpu_custom_call.1} parent=1 // pred_check
      _
    $region51: #{tpu_custom_call.1} parent=1 // pred_check_branch
      %538 = sbr.rel (0) target = $region53
    $region52: #{tpu_custom_call.1} parent=1 // pred_region
      %539 = dma.done [#allocation4], 32
    $region53: #{tpu_custom_call.1} parent=1 // pred_fallthru
      _
    %540 = vsyncpa [#allocation4], 1

</llo_original>
